<compile_context>
chip_gen: v7x
topology: tpu7x:2x2x1
jax: 0.10.0
libtpu: 0.0.40
codegen_flags: <defaults>
</compile_context>

<pallas_src>
import math
import functools

import jax
import jax.numpy as jnp
from jax import lax
from jax.experimental import pallas as pl
from jax.experimental.pallas import tpu as pltpu


# --------------------------------------------------------------------------
# helpers
# --------------------------------------------------------------------------
def _pick_n_tile(n, max_tile):
    cands = [t for t in (4096, 2048, 1024, 512, 256, 128) if t <= max_tile]
    # Prefer >= 2 tiles so a 'parallel' grid axis can feed both v7x TensorCores.
    for t in cands:
        if n % t == 0 and n // t >= 2:
            return t
    for t in cands:
        if n % t == 0:
            return t
    return n                      # full-width single block (always legal)


def _block_diag(blocks):
    """blocks: [L, r, c] -> [L*r, L*c] block-diagonal matrix (L is static)."""
    L, r, c = blocks.shape
    out = jnp.zeros((L * r, L * c), blocks.dtype)
    for l in range(L):
        out = out.at[l * r:(l + 1) * r, l * c:(l + 1) * c].set(blocks[l])
    return out


def _softplus(x):
    # PyTorch F.softplus(beta=1, threshold=20) with a log1p-accurate small-t
    # path (avoids relying on a log1p lowering inside Mosaic).
    t = jnp.exp(jnp.minimum(x, 20.0))
    log1p_t = jnp.where(t < 1e-2,
                        t * (1.0 - t * (0.5 - t * (1.0 / 3.0))),
                        jnp.log(1.0 + t))
    return jnp.where(x > 20.0, x, log1p_t)


# --------------------------------------------------------------------------
# Fused per-layer kernel
#   inputs : A [rows_in, tn], P_bd [rows_out, rows_in], bias [rows_out, 1]
#            (+ bnm, bns [rows_in,1], e1, e2 [L*d_prev, tn]  if fuse_ixz)
#   outputs: Y [rows_out, tn]
#            (+ stats [rows_out, 2]  if emit_stats)
#            (+ ixz   [1, tn]        if fuse_ixz, prev layer's I(X;Z) partial)
# --------------------------------------------------------------------------
def _layer_kernel(*refs, L, d_prev, apply_relu, emit_stats, fuse_ixz):
    it = iter(refs)
    a_ref = next(it)
    p_ref = next(it)
    b_ref = next(it)
    if fuse_ixz:
        bnm_ref = next(it)
        bns_ref = next(it)
        e1_ref = next(it)
        e2_ref = next(it)
    y_ref = next(it)
    stats_ref = next(it) if emit_stats else None
    ixz_ref = next(it) if fuse_ixz else None

    a = a_ref[...]                                           # (rows_in, tn)

    # -- block-diagonal matmul (prev-layer BN already folded into P / bias) --
    y = lax.dot_general(p_ref[...], a,
                        dimension_numbers=(((1,), (0,)), ((), ())),
                        preferred_element_type=jnp.float32)
    y = y + b_ref[...]
    if apply_relu:
        y = jnp.maximum(y, 0.0)
    y_ref[...] = y.astype(y_ref.dtype)

    # -- BatchNorm batch-statistics partials (per-tile channel sums) --
    if emit_stats:
        stats_ref[...] = jnp.concatenate(
            [jnp.sum(y, axis=1, keepdims=True),
             jnp.sum(y * y, axis=1, keepdims=True)], axis=1)  # (rows_out, 2)

    # -- previous layer's I(X;Z), reusing the already-loaded raw activation --
    if fuse_ixz:
        tn = a.shape[1]
        ynorm = (a - bnm_ref[...]) * bns_ref[...]             # folded BatchNorm
        y3 = ynorm.reshape(L, 2 * d_prev, tn)
        mean = y3[:, :d_prev, :].reshape(L * d_prev, tn)
        raw = y3[:, d_prev:, :].reshape(L * d_prev, tn)
        std = _softplus(raw) + 1e-10
        log_std = jnp.log(std)
        e1 = e1_ref[...]                                      # E_s[eps]
        e2 = e2_ref[...]                                      # E_s[eps^2]
        # mean_s[ -log std + 0.5*(z^2 - eps^2) ] with z = mean + std*eps
        # (the 0.5*log(2*pi) terms of the two log-probs cancel exactly).
        contrib = (0.5 * mean * mean + mean * std * e1
                   + 0.5 * (std * std - 1.0) * e2 - log_std)
        ixz_ref[...] = jnp.sum(contrib, axis=0, keepdims=True)  # (1, tn)


def fused_layer(A, P_bd, bias_bd, *, L, d_prev, bn, eps_mom,
                apply_relu, emit_stats):
    rows_in, N = A.shape
    rows_out = P_bd.shape[0]
    fuse_ixz = bn is not None
    tn = _pick_n_tile(N, 512 if fuse_ixz else 2048)
    n_tiles = N // tn

    in_arrays = [A, P_bd, bias_bd]
    in_specs = [
        pl.BlockSpec((rows_in, tn), lambda j: (0, j)),
        pl.BlockSpec((rows_out, rows_in), lambda j: (0, 0)),
        pl.BlockSpec((rows_out, 1), lambda j: (0, 0)),
    ]
    if fuse_ixz:
        bnm, bns = bn
        e1, e2 = eps_mom
        in_arrays += [bnm, bns, e1, e2]
        in_specs += [
            pl.BlockSpec((rows_in, 1), lambda j: (0, 0)),
            pl.BlockSpec((rows_in, 1), lambda j: (0, 0)),
            pl.BlockSpec((L * d_prev, tn), lambda j: (0, j)),
            pl.BlockSpec((L * d_prev, tn), lambda j: (0, j)),
        ]

    out_shapes = [jax.ShapeDtypeStruct((rows_out, N), jnp.float32)]
    out_specs = [pl.BlockSpec((rows_out, tn), lambda j: (0, j))]
    if emit_stats:
        out_shapes.append(jax.ShapeDtypeStruct((n_tiles, rows_out, 2),
                                               jnp.float32))
        out_specs.append(pl.BlockSpec((pl.Squeezed(), rows_out, 2),
                                      lambda j: (j, 0, 0)))
    if fuse_ixz:
        out_shapes.append(jax.ShapeDtypeStruct((1, N), jnp.float32))
        out_specs.append(pl.BlockSpec((1, tn), lambda j: (0, j)))

    kernel = functools.partial(_layer_kernel, L=L, d_prev=d_prev,
                               apply_relu=apply_relu, emit_stats=emit_stats,
                               fuse_ixz=fuse_ixz)
    outs = pl.pallas_call(
        kernel,
        out_shape=tuple(out_shapes),
        grid_spec=pltpu.PrefetchScalarGridSpec(
            num_scalar_prefetch=0,
            grid=(n_tiles,),
            in_specs=in_specs,
            out_specs=out_specs),
        compiler_params=pltpu.CompilerParams(
            dimension_semantics=("parallel",)),
    )(*in_arrays)
    return outs


# --------------------------------------------------------------------------
# Parameter init (matches PyTorch: P1 ~ U[-ini, ini])
# --------------------------------------------------------------------------
def init_params(key, nested_dim, dims):
    params = []
    for i in range(len(dims) - 1):
        key, sub = jax.random.split(key)
        in_dim, out_dim = dims[i], dims[i + 1]
        ini = math.sqrt(3.0 / out_dim / 2.0 / in_dim)
        P = jax.random.uniform(sub, (nested_dim, 2 * out_dim, in_dim),
                               dtype=jnp.float32, minval=-ini, maxval=ini)
        params.append(P)
    return params


# --------------------------------------------------------------------------
# Full forward pass
# --------------------------------------------------------------------------
def eib_gnn1d_forward(Hhat, params, dims, *, nbrOfRealizations, L, K, U,
                      BATCH_SIZE, sample_size, noise_key):
    B, R = BATCH_SIZE, nbrOfRealizations
    N = B * R

    # --- input packing (PyTorch: real/imag -> [N, 2*K*U, L]) ---
    Hre = jnp.real(Hhat).reshape(N, 1, L, K, U)
    Him = jnp.imag(Hhat).reshape(N, 1, L, K, U)
    Hre = jnp.transpose(Hre, (0, 1, 3, 4, 2))                 # [N,1,K,U,L]
    Him = jnp.transpose(Him, (0, 1, 3, 4, 2))
    Hcat = jnp.concatenate([Hre, Him], axis=1).reshape(N, 2 * K * U, L)
    # kernel layout: [L*C, N]   (row = l * C + c)
    A = jnp.transpose(Hcat.astype(jnp.float32), (2, 1, 0)).reshape(
        L * 2 * K * U, N)

    n_layers = len(dims) - 1
    I_tot = jnp.zeros((N,), jnp.float32)
    bn_mean = bn_scale = None                 # previous layer's BN batch stats

    for i in range(n_layers):
        d_in, d_out = dims[i], dims[i + 1]
        is_last = (i == n_layers - 1)
        has_prev_bn = bn_mean is not None
        P = params[i]                                         # [L, 2*d_out, d_in]

        # ---- fold previous layer's BN (gamma=1, beta=0) into weights ----
        # TODO(synk): include learned gamma/beta here to match a *trained*
        # PyTorch BatchNorm1d (affine=True); defaults are 1/0 as assumed.
        if has_prev_bn:
            s_m = bn_scale[:d_in]
            m_m = bn_mean[:d_in]
            W = P * s_m[None, None, :]
            bias_l = -jnp.einsum('loc,c->lo', P, s_m * m_m)
            cols = 2 * d_in                   # raw prev output has 2*d_in chans
            W_pad = jnp.concatenate(
                [W, jnp.zeros((L, 2 * d_out, cols - d_in), jnp.float32)],
                axis=-1)                      # std-channel columns are zero
        else:
            bias_l = jnp.zeros((L, 2 * d_out), jnp.float32)
            cols = d_in
            W_pad = P
        P_bd = _block_diag(W_pad)                             # [L*2*d_out, L*cols]
        bias_bd = bias_l.reshape(L * 2 * d_out, 1)

        # ---- prev layer's I(X;Z) data (BN params + hoisted eps moments) ----
        bn = eps_mom = None
        if has_prev_bn:
            bn = (jnp.tile(bn_mean, L).reshape(-1, 1),
                  jnp.tile(bn_scale, L).reshape(-1, 1))
            k = jax.random.fold_in(noise_key, i - 1)
            eps = jax.random.normal(k, (sample_size, L * d_in, N), jnp.float32)
            eps_mom = (jnp.mean(eps, axis=0), jnp.mean(eps * eps, axis=0))

        outs = fused_layer(A, P_bd, bias_bd, L=L, d_prev=d_in,
                           bn=bn, eps_mom=eps_mom,
                           apply_relu=not is_last, emit_stats=not is_last)
        oi = 0
        Y = outs[oi]; oi += 1
        stats = None
        if not is_last:
            stats = outs[oi]; oi += 1
        if has_prev_bn:
            I_tot = I_tot + outs[oi][0]; oi += 1

        # ---- finish BatchNorm batch statistics (tiny reduction in JAX) ----
        if not is_last:
            tot = jnp.sum(stats, axis=0)                      # (rows_out, 2)
            s1 = tot[:, 0].reshape(L, 2 * d_out).sum(axis=0)
            s2 = tot[:, 1].reshape(L, 2 * d_out).sum(axis=0)
            cnt = float(L * N)
            mean_c = s1 / cnt
            var_c = jnp.maximum(s2 / cnt - mean_c * mean_c, 0.0)
            bn_mean = mean_c
            bn_scale = lax.rsqrt(var_c + 1e-5)                # eps = 1e-5

        A = Y
    # TODO(synk): PyTorch also computes (then discards) the last layer's I_XZ;
    # it does not affect any output and is skipped here.

    # --- back to PyTorch layout [N, C, L]; beamformer post-processing ---
    out_dim = dims[-1]
    A3 = A.reshape(L, 2 * out_dim, N)[:, :out_dim, :]         # [L, out_dim, N]
    Hu = jnp.transpose(A3, (2, 1, 0))                         # [N, out_dim, L]

    F5 = Hu[:, :2 * K * U].reshape(N, 2, K, U, L)
    F1 = jnp.transpose(F5[:, 0], (0, 3, 1, 2))                # [N, L, K, U]
    F2 = jnp.transpose(F5[:, 1], (0, 3, 1, 2))
    F3 = jnp.sqrt(jnp.sum(F1 ** 2, axis=3) + jnp.sum(F2 ** 2, axis=3))[..., None]
    Fc = (F1 + 1j * F2) / F3                                  # complex64

    Pp = Hu[:, 2 * K * U:].reshape(B, R, K, L)
    Pp = jnp.transpose(Pp, (0, 1, 3, 2))                      # [B, R, L, K]
    Pn = jnp.linalg.norm(Pp, axis=2)                          # [B, R, K]
    Phat = Pp / Pn[:, :, None, :] * math.sqrt(L)

    Fhat = Fc.reshape(B, R, L, K, U) * Phat[..., None]
    return Fhat, I_tot


# --------------------------------------------------------------------------
if __name__ == "__main__":
    BATCH_SIZE = 2
    nbrOfRealizations = 64               # N = 128 -> lane-dense tiles
    L, K, U = 4, 3, 2
    sample_size = 2
    nested_dim = L                       # forward requires nested_dim == L
    input_dim = 2 * K * U                # 12
    hidden_dim = (16, 16)
    output_dim = 2 * K * U + K           # 15 (required by the forward slicing)
    dims = [input_dim] + list(hidden_dim) + [output_dim]

    key = jax.random.PRNGKey(0)
    k_param, k_re, k_im, k_noise = jax.random.split(key, 4)
    params = init_params(k_param, nested_dim, dims)

    Hhat = (jax.random.normal(k_re, (BATCH_SIZE, nbrOfRealizations, L, K, U),
                              dtype=jnp.float32)
            + 1j * jax.random.normal(k_im, (BATCH_SIZE, nbrOfRealizations, L, K, U),
                                     dtype=jnp.float32)).astype(jnp.complex64)

    Fhat, I_tot = eib_gnn1d_forward(
        Hhat, params, dims,
        nbrOfRealizations=nbrOfRealizations, L=L, K=K, U=U,
        BATCH_SIZE=BATCH_SIZE, sample_size=sample_size, noise_key=k_noise)
    jax.block_until_ready((Fhat, I_tot))

    assert Fhat.shape == (BATCH_SIZE, nbrOfRealizations, L, K, U)
    assert jnp.iscomplexobj(Fhat)
    assert I_tot.shape == (BATCH_SIZE * nbrOfRealizations,)
    assert bool(jnp.all(jnp.isfinite(I_tot)))
    assert bool(jnp.all(jnp.isfinite(jnp.abs(Fhat))))
    print("KERNEL_OK")
</pallas_src>

<mosaic_0001>
module attributes {stable_mosaic.version = 11 : i64} {
  func.func @_layer_kernel(%arg0: i32, %arg1: memref<48x128xf32, #tpu.memory_space<vmem>>, %arg2: memref<128x48xf32, #tpu.memory_space<vmem>>, %arg3: memref<128x1xf32, #tpu.memory_space<vmem>>, %arg4: memref<128x128xf32, #tpu.memory_space<vmem>>, %arg5: memref<1x128x2xf32, #tpu.memory_space<vmem>>) attributes {dimension_semantics = [#tpu.dimension_semantics<parallel>], iteration_bounds = array<i64: 1>, scalar_prefetch = 0 : i64, scratch_operands = 0 : i64, tpu.core_type = #tpu.core_type<tc>, window_params = [{transform_indices = @transform_0, window_bounds = array<i64: 48, 128>}, {pipeline_mode = #tpu.pipeline_mode<synchronous>, transform_indices = @transform_1, window_bounds = array<i64: 128, 48>}, {pipeline_mode = #tpu.pipeline_mode<synchronous>, transform_indices = @transform_2, window_bounds = array<i64: 128, 1>}, {transform_indices = @transform_3, window_bounds = array<i64: 128, 128>}, {transform_indices = @transform_4, window_bounds = array<i64: 1, 128, 2>}]} {
    %c0 = arith.constant 0 : index
    %c0_0 = arith.constant 0 : index
    %0 = vector.load %arg1[%c0, %c0_0] : memref<48x128xf32, #tpu.memory_space<vmem>>, vector<48x128xf32>
    %c0_1 = arith.constant 0 : index
    %c0_2 = arith.constant 0 : index
    %1 = vector.load %arg2[%c0_1, %c0_2] : memref<128x48xf32, #tpu.memory_space<vmem>>, vector<128x48xf32>
    %cst = arith.constant dense<0.000000e+00> : vector<128x128xf32>
    %2 = tpu.matmul %1, %0, %cst {dimension_numbers = #tpu.dot_dimension_numbers<[1], [0], [0], [1], [0, 0, 1, 1], [], []>} : vector<128x48xf32>, vector<48x128xf32>, vector<128x128xf32> -> vector<128x128xf32>
    %c0_3 = arith.constant 0 : index
    %c0_4 = arith.constant 0 : index
    %3 = vector.load %arg3[%c0_3, %c0_4] : memref<128x1xf32, #tpu.memory_space<vmem>>, vector<128x1xf32>
    %4 = vector.broadcast %3 : vector<128x1xf32> to vector<128x128xf32>
    %5 = arith.addf %2, %4 : vector<128x128xf32>
    %cst_5 = arith.constant 0.000000e+00 : f32
    %6 = vector.broadcast %cst_5 : f32 to vector<128x128xf32>
    %7 = arith.maximumf %5, %6 : vector<128x128xf32>
    %c0_6 = arith.constant 0 : index
    %c0_7 = arith.constant 0 : index
    %8 = vector.load %arg4[%c0_6, %c0_7] : memref<128x128xf32, #tpu.memory_space<vmem>>, vector<128x128xf32>
    tpu.vector_store %arg4[%c0_6, %c0_7], %7 {strides = array<i32>} : memref<128x128xf32, #tpu.memory_space<vmem>>, vector<128x128xf32>,
    %cst_8 = arith.constant dense<0.000000e+00> : vector<128xf32>
    %9 = vector.multi_reduction <add>, %7, %cst_8 [1] : vector<128x128xf32> to vector<128xf32>
    %10 = vector.shape_cast %9 : vector<128xf32> to vector<128x1xf32>
    %11 = arith.mulf %7, %7 : vector<128x128xf32>
    %cst_9 = arith.constant dense<0.000000e+00> : vector<128xf32>
    %12 = vector.multi_reduction <add>, %11, %cst_9 [1] : vector<128x128xf32> to vector<128xf32>
    %13 = vector.shape_cast %12 : vector<128xf32> to vector<128x1xf32>
    %14 = tpu.concatenate %10, %13 in 1 : vector<128x1xf32>, vector<128x1xf32> -> vector<128x2xf32>
    %c0_10 = arith.constant 0 : index
    %c0_11 = arith.constant 0 : index
    %c0_12 = arith.constant 0 : index
    %15 = vector.load %arg5[%c0_10, %c0_11, %c0_12] : memref<1x128x2xf32, #tpu.memory_space<vmem>>, vector<1x128x2xf32>
    %16 = vector.shape_cast %15 : vector<1x128x2xf32> to vector<128x2xf32>
    %17 = vector.shape_cast %14 : vector<128x2xf32> to vector<1x128x2xf32>
    tpu.vector_store %arg5[%c0_10, %c0_11, %c0_12], %17 {strides = array<i32>} : memref<1x128x2xf32, #tpu.memory_space<vmem>>, vector<1x128x2xf32>,
    return
  }
  func.func @transform_0(%arg0: i32) -> (i32, i32) {
    %c0_i32 = arith.constant 0 : i32
    %c0_i32_0 = arith.constant 0 : i32
    return %c0_i32, %arg0 : i32, i32
  }
  func.func @transform_1(%arg0: i32) -> (i32, i32) {
    %c0_i32 = arith.constant 0 : i32
    %c0_i32_0 = arith.constant 0 : i32
    %c0_i32_1 = arith.constant 0 : i32
    return %c0_i32, %c0_i32_0 : i32, i32
  }
  func.func @transform_2(%arg0: i32) -> (i32, i32) {
    %c0_i32 = arith.constant 0 : i32
    %c0_i32_0 = arith.constant 0 : i32
    %c0_i32_1 = arith.constant 0 : i32
    return %c0_i32, %c0_i32_0 : i32, i32
  }
  func.func @transform_3(%arg0: i32) -> (i32, i32) {
    %c0_i32 = arith.constant 0 : i32
    %c0_i32_0 = arith.constant 0 : i32
    return %c0_i32, %arg0 : i32, i32
  }
  func.func @transform_4(%arg0: i32) -> (i32, i32, i32) {
    %c0_i32 = arith.constant 0 : i32
    %c0_i32_0 = arith.constant 0 : i32
    %c0_i32_1 = arith.constant 0 : i32
    return %arg0, %c0_i32, %c0_i32_0 : i32, i32, i32
  }
}

</mosaic_0001>

<llo_original>
// kernel: tpu_custom_call.1
$region0: #{tpu_custom_call.1}
  #allocation0 [shape = 'u32[]', space=smem, size = 0x4, offset = 0x4, fixed_abs, tag = 'smem constant byte address 0x4 - core index']
  #allocation1 [shape = 'u32[144,128]{1,0:T(1,128)}', space=vmem, size = 0x12000, scoped, tag = 'internal scratch']
  %s0 = inlined_call_operand.vmem [shape: f32[48,128], index: 0, kind: input, shape index: {}]
  %s1 = inlined_call_operand.vmem [shape: f32[128,48], index: 1, kind: input, shape index: {}]
  %s2 = inlined_call_operand.vmem [shape: f32[128,1], index: 2, kind: input, shape index: {}]
  %s3 = inlined_call_operand.hbm [shape: f32[128,128], index: 3, kind: output, shape index: {0}]
  %s4 = inlined_call_operand.vmem [shape: f32[1,128,2], index: 4, kind: output, shape index: {1}]
  %5 = xla_tuple %s3, %s4
  %s6 = sld [smem:[#allocation0]]
  $region30: #{tpu_custom_call.1} parent=0
    _
  %s8 = ssub.s32 1, %s6
  %s9 = scalar_select 0, %s8, %s6
  $region1: #{tpu_custom_call.1} parent=0
    #allocation2 [shape = 'u8[65536]{0}', space=vmem, size = 0x10000, scoped, tag = 'output window, operand 0, single buffered']
    #allocation3 [shape = 's32[1]{0}', space=sflag, size = 0x4, scoped, tag = 'scoped memory for tpu_custom_call.1']
    %10 = vsyncpa [#allocation3], 0
    // Predicated region
    $region2: #{tpu_custom_call.1} parent=1 // pred_check
      _
    $region3: #{tpu_custom_call.1} parent=1 // pred_check_branch
      %12 = sbr.rel (0) target = $region5
    $region4: #{tpu_custom_call.1} parent=1 // pred_region
      _
    $region5: #{tpu_custom_call.1} parent=1 // pred_fallthru
      _
    // Predicated region
    $region6: #{tpu_custom_call.1} parent=1 // pred_check
      _
    $region7: #{tpu_custom_call.1} parent=1 // pred_check_branch
      %14 = sbr.rel (0) target = $region9
    $region8: #{tpu_custom_call.1} parent=1 // pred_region
      _
    $region9: #{tpu_custom_call.1} parent=1 // pred_fallthru
      _
    // Predicated region
    $region10: #{tpu_custom_call.1} parent=1 // pred_check
      _
    $region11: #{tpu_custom_call.1} parent=1 // pred_check_branch
      %16 = sbr.rel (0) target = $region13
    $region12: #{tpu_custom_call.1} parent=1 // pred_region
      _
    $region13: #{tpu_custom_call.1} parent=1 // pred_fallthru
      _
    %v17 = vld [vmem:[%s0] sm:$0xff]
    %v18 = vld [vmem:[%s0 + $0x8] sm:$0xff]
    %v19 = vld [vmem:[%s0 + $0x10] sm:$0xff]
    %v20 = vld [vmem:[%s0 + $0x18] sm:$0xff]
    %v21 = vld [vmem:[%s0 + $0x20] sm:$0xff]
    %v22 = vld [vmem:[%s0 + $0x28] sm:$0xff]
    %v23 = vld [vmem:[%s1] sm:$0xff]
    %v24 = vld [vmem:[%s1 + $0x8] sm:$0xff]
    %v25 = vld [vmem:[%s1 + $0x10] sm:$0xff]
    %v26 = vld [vmem:[%s1 + $0x18] sm:$0xff]
    %v27 = vld [vmem:[%s1 + $0x20] sm:$0xff]
    %v28 = vld [vmem:[%s1 + $0x28] sm:$0xff]
    %v29 = vld [vmem:[%s1 + $0x30] sm:$0xff]
    %v30 = vld [vmem:[%s1 + $0x38] sm:$0xff]
    %v31 = vld [vmem:[%s1 + $0x40] sm:$0xff]
    %v32 = vld [vmem:[%s1 + $0x48] sm:$0xff]
    %v33 = vld [vmem:[%s1 + $0x50] sm:$0xff]
    %v34 = vld [vmem:[%s1 + $0x58] sm:$0xff]
    %v35 = vld [vmem:[%s1 + $0x60] sm:$0xff]
    %v36 = vld [vmem:[%s1 + $0x68] sm:$0xff]
    %v37 = vld [vmem:[%s1 + $0x70] sm:$0xff]
    %v38 = vld [vmem:[%s1 + $0x78] sm:$0xff]
    %v39 = vld [vmem:[%s2] sm:$0xff]
    %v40 = vld [vmem:[%s2 + $0x8] sm:$0xff]
    %v41 = vld [vmem:[%s2 + $0x10] sm:$0xff]
    %v42 = vld [vmem:[%s2 + $0x18] sm:$0xff]
    %v43 = vld [vmem:[%s2 + $0x20] sm:$0xff]
    %v44 = vld [vmem:[%s2 + $0x28] sm:$0xff]
    %v45 = vld [vmem:[%s2 + $0x30] sm:$0xff]
    %v46 = vld [vmem:[%s2 + $0x38] sm:$0xff]
    %v47 = vld [vmem:[%s2 + $0x40] sm:$0xff]
    %v48 = vld [vmem:[%s2 + $0x48] sm:$0xff]
    %v49 = vld [vmem:[%s2 + $0x50] sm:$0xff]
    %v50 = vld [vmem:[%s2 + $0x58] sm:$0xff]
    %v51 = vld [vmem:[%s2 + $0x60] sm:$0xff]
    %v52 = vld [vmem:[%s2 + $0x68] sm:$0xff]
    %v53 = vld [vmem:[%s2 + $0x70] sm:$0xff]
    %v54 = vld [vmem:[%s2 + $0x78] sm:$0xff]
    %56 = vset.pattern.permute.xlu0 0
    %57 = vperm.xlu0 %56, %v39
    %v58 = vpop.permute.xlu0 %57
    %61 = vset.pattern.permute.xlu0 0
    %62 = vperm.xlu0 %61, %v40
    %v63 = vpop.permute.xlu0 %62
    %66 = vset.pattern.permute.xlu0 0
    %67 = vperm.xlu0 %66, %v41
    %v68 = vpop.permute.xlu0 %67
    %71 = vset.pattern.permute.xlu0 0
    %72 = vperm.xlu0 %71, %v42
    %v73 = vpop.permute.xlu0 %72
    %76 = vset.pattern.permute.xlu0 0
    %77 = vperm.xlu0 %76, %v43
    %v78 = vpop.permute.xlu0 %77
    %81 = vset.pattern.permute.xlu0 0
    %82 = vperm.xlu0 %81, %v44
    %v83 = vpop.permute.xlu0 %82
    %86 = vset.pattern.permute.xlu0 0
    %87 = vperm.xlu0 %86, %v45
    %v88 = vpop.permute.xlu0 %87
    %91 = vset.pattern.permute.xlu0 0
    %92 = vperm.xlu0 %91, %v46
    %v93 = vpop.permute.xlu0 %92
    %96 = vset.pattern.permute.xlu0 0
    %97 = vperm.xlu0 %96, %v47
    %v98 = vpop.permute.xlu0 %97
    %101 = vset.pattern.permute.xlu0 0
    %102 = vperm.xlu0 %101, %v48
    %v103 = vpop.permute.xlu0 %102
    %106 = vset.pattern.permute.xlu0 0
    %107 = vperm.xlu0 %106, %v49
    %v108 = vpop.permute.xlu0 %107
    %111 = vset.pattern.permute.xlu0 0
    %112 = vperm.xlu0 %111, %v50
    %v113 = vpop.permute.xlu0 %112
    %116 = vset.pattern.permute.xlu0 0
    %117 = vperm.xlu0 %116, %v51
    %v118 = vpop.permute.xlu0 %117
    %121 = vset.pattern.permute.xlu0 0
    %122 = vperm.xlu0 %121, %v52
    %v123 = vpop.permute.xlu0 %122
    %126 = vset.pattern.permute.xlu0 0
    %127 = vperm.xlu0 %126, %v53
    %v128 = vpop.permute.xlu0 %127
    %131 = vset.pattern.permute.xlu0 0
    %132 = vperm.xlu0 %131, %v54
    %v133 = vpop.permute.xlu0 %132
    %vm135 = vcmask 392192
    %v137 = vsel %vm135, %v23, 0
    %v140 = vsel %vm135, %v24, 0
    %v143 = vsel %vm135, %v25, 0
    %v146 = vsel %vm135, %v26, 0
    %v149 = vsel %vm135, %v27, 0
    %v152 = vsel %vm135, %v28, 0
    %v155 = vsel %vm135, %v29, 0
    %v158 = vsel %vm135, %v30, 0
    %v161 = vsel %vm135, %v31, 0
    %v164 = vsel %vm135, %v32, 0
    %v167 = vsel %vm135, %v33, 0
    %v170 = vsel %vm135, %v34, 0
    %v173 = vsel %vm135, %v35, 0
    %v176 = vsel %vm135, %v36, 0
    %v179 = vsel %vm135, %v37, 0
    %v182 = vsel %vm135, %v38, 0
    %184 = vmatprep.subr.mxu0 0.0
    %185 = vmatpush1.msra.mxu0 %v17
    %186 = vmatprep.subr.mxu0 0.0
    %187 = vmatpush1.msra.mxu0 %v18
    %188 = vmatprep.subr.mxu0 0.0
    %189 = vmatpush1.msra.mxu0 %v19
    %190 = vmatprep.subr.mxu0 0.0
    %191 = vmatpush1.msra.mxu0 %v20
    %192 = vmatprep.subr.mxu0 0.0
    %193 = vmatpush1.msra.mxu0 %v21
    %194 = vmatprep.subr.mxu0 0.0
    %195 = vmatpush1.msra.mxu0 %v22
    %196 = vmatprep.subr.mxu0 0.0
    %197 = vmatpush1.msra.mxu0 0.0
    %198 = vmatprep.subr.mxu0 0.0
    %199 = vmatpush1.msra.mxu0 0.0
    %200 = vmatprep.subr.mxu0 0.0
    %201 = vmatpush1.msra.mxu0 0.0
    %202 = vmatprep.subr.mxu0 0.0
    %203 = vmatpush1.msra.mxu0 0.0
    %204 = vmatprep.subr.mxu0 0.0
    %205 = vmatpush1.msra.mxu0 0.0
    %206 = vmatprep.subr.mxu0 0.0
    %207 = vmatpush1.msra.mxu0 0.0
    %208 = vmatprep.subr.mxu0 0.0
    %209 = vmatpush1.msra.mxu0 0.0
    %210 = vmatprep.subr.mxu0 0.0
    %211 = vmatpush1.msra.mxu0 0.0
    %212 = vmatprep.subr.mxu0 0.0
    %213 = vmatpush1.msra.mxu0 0.0
    %214 = vmatprep.subr.mxu0 0.0
    %215 = vmatpush1.msra.mxu0 0.0
    %216 = vmatprep.subr.mxu0 0.0
    %217 = vmatpush1.msra.mxu0 0.0
    %218 = vmatprep.subr.mxu0 0.0
    %219 = vmatpush1.msra.mxu0 0.0
    %220 = vmatprep.subr.mxu0 0.0
    %221 = vmatpush1.msra.mxu0 0.0
    %222 = vmatprep.subr.mxu0 0.0
    %223 = vmatpush1.msra.mxu0 0.0
    %224 = vmatprep.subr.mxu0 0.0
    %225 = vmatpush1.msra.mxu0 0.0
    %226 = vmatprep.subr.mxu0 0.0
    %227 = vmatpush1.msra.mxu0 0.0
    %228 = vmatprep.subr.mxu0 0.0
    %229 = vmatpush1.msra.mxu0 0.0
    %230 = vmatprep.subr.mxu0 0.0
    %231 = vmatpush1.msra.mxu0 0.0
    %232 = vmatprep.subr.mxu0 0.0
    %233 = vmatpush1.msra.mxu0 0.0
    %234 = vmatprep.subr.mxu0 0.0
    %235 = vmatpush1.msra.mxu0 0.0
    %236 = vmatprep.subr.mxu0 0.0
    %237 = vmatpush1.msra.mxu0 0.0
    %238 = vmatprep.subr.mxu0 0.0
    %239 = vmatpush1.msra.mxu0 0.0
    %240 = vmatprep.subr.mxu0 0.0
    %241 = vmatpush1.msra.mxu0 0.0
    %242 = vmatprep.subr.mxu0 0.0
    %243 = vmatpush1.msra.mxu0 0.0
    %244 = vmatprep.subr.mxu0 0.0
    %245 = vmatpush1.msra.mxu0 0.0
    %246 = vmatprep.subr.mxu0 0.0
    %247 = vmatpush1.msra.mxu0 0.0
    %248 = vmatprep.mubr.f32.mxu0 0.0
    %249 = vmatmul.mubr.f32.gmra.mrb[0].mxu0 %v137
    %v250 = vpop.f32.mrb[0].mxu0
    %v251 = vadd.f32 %v58, %v250
    %v252 = vpop.f32.mrb[0].mxu0
    %253 = vmatprep.mubr.f32.mxu0 0.0
    %254 = vmatmul.mubr.f32.gmra.mrb[0].mxu0 %v140
    %v255 = vpop.f32.mrb[0].mxu0
    %v256 = vadd.f32 %v63, %v255
    %v257 = vpop.f32.mrb[0].mxu0
    %258 = vmatprep.mubr.f32.mxu0 0.0
    %259 = vmatmul.mubr.f32.gmra.mrb[0].mxu0 %v143
    %v260 = vpop.f32.mrb[0].mxu0
    %v261 = vadd.f32 %v68, %v260
    %v262 = vpop.f32.mrb[0].mxu0
    %263 = vmatprep.mubr.f32.mxu0 0.0
    %264 = vmatmul.mubr.f32.gmra.mrb[0].mxu0 %v146
    %v265 = vpop.f32.mrb[0].mxu0
    %v266 = vadd.f32 %v73, %v265
    %v267 = vpop.f32.mrb[0].mxu0
    %268 = vmatprep.mubr.f32.mxu0 0.0
    %269 = vmatmul.mubr.f32.gmra.mrb[0].mxu0 %v149
    %v270 = vpop.f32.mrb[0].mxu0
    %v271 = vadd.f32 %v78, %v270
    %v272 = vpop.f32.mrb[0].mxu0
    %273 = vmatprep.mubr.f32.mxu0 0.0
    %274 = vmatmul.mubr.f32.gmra.mrb[0].mxu0 %v152
    %v275 = vpop.f32.mrb[0].mxu0
    %v276 = vadd.f32 %v83, %v275
    %v277 = vpop.f32.mrb[0].mxu0
    %278 = vmatprep.mubr.f32.mxu0 0.0
    %279 = vmatmul.mubr.f32.gmra.mrb[0].mxu0 %v155
    %v280 = vpop.f32.mrb[0].mxu0
    %v281 = vadd.f32 %v88, %v280
    %v282 = vpop.f32.mrb[0].mxu0
    %283 = vmatprep.mubr.f32.mxu0 0.0
    %284 = vmatmul.mubr.f32.gmra.mrb[0].mxu0 %v158
    %v285 = vpop.f32.mrb[0].mxu0
    %v286 = vadd.f32 %v93, %v285
    %v287 = vpop.f32.mrb[0].mxu0
    %288 = vmatprep.mubr.f32.mxu0 0.0
    %289 = vmatmul.mubr.f32.gmra.mrb[0].mxu0 %v161
    %v290 = vpop.f32.mrb[0].mxu0
    %v291 = vadd.f32 %v98, %v290
    %v292 = vpop.f32.mrb[0].mxu0
    %293 = vmatprep.mubr.f32.mxu0 0.0
    %294 = vmatmul.mubr.f32.gmra.mrb[0].mxu0 %v164
    %v295 = vpop.f32.mrb[0].mxu0
    %v296 = vadd.f32 %v103, %v295
    %v297 = vpop.f32.mrb[0].mxu0
    %298 = vmatprep.mubr.f32.mxu0 0.0
    %299 = vmatmul.mubr.f32.gmra.mrb[0].mxu0 %v167
    %v300 = vpop.f32.mrb[0].mxu0
    %v301 = vadd.f32 %v108, %v300
    %v302 = vpop.f32.mrb[0].mxu0
    %303 = vmatprep.mubr.f32.mxu0 0.0
    %304 = vmatmul.mubr.f32.gmra.mrb[0].mxu0 %v170
    %v305 = vpop.f32.mrb[0].mxu0
    %v306 = vadd.f32 %v113, %v305
    %v307 = vpop.f32.mrb[0].mxu0
    %308 = vmatprep.mubr.f32.mxu0 0.0
    %309 = vmatmul.mubr.f32.gmra.mrb[0].mxu0 %v173
    %v310 = vpop.f32.mrb[0].mxu0
    %v311 = vadd.f32 %v118, %v310
    %v312 = vpop.f32.mrb[0].mxu0
    %313 = vmatprep.mubr.f32.mxu0 0.0
    %314 = vmatmul.mubr.f32.gmra.mrb[0].mxu0 %v176
    %v315 = vpop.f32.mrb[0].mxu0
    %v316 = vadd.f32 %v123, %v315
    %v317 = vpop.f32.mrb[0].mxu0
    %318 = vmatprep.mubr.f32.mxu0 0.0
    %319 = vmatmul.mubr.f32.gmra.mrb[0].mxu0 %v179
    %v320 = vpop.f32.mrb[0].mxu0
    %v321 = vadd.f32 %v128, %v320
    %v322 = vpop.f32.mrb[0].mxu0
    %323 = vmatprep.mubr.f32.mxu0 0.0
    %324 = vmatmul.mubr.f32.gmra.mrb[0].mxu0 %v182
    %v325 = vpop.f32.mrb[0].mxu0
    %v326 = vadd.f32 %v133, %v325
    %v327 = vpop.f32.mrb[0].mxu0
    %328 = vdwg.mxu0
    %v329 = vmax.f32 %v251, 0.0
    %v330 = vmax.f32 %v256, 0.0
    %v331 = vmax.f32 %v261, 0.0
    %v332 = vmax.f32 %v266, 0.0
    %v333 = vmax.f32 %v271, 0.0
    %v334 = vmax.f32 %v276, 0.0
    %v335 = vmax.f32 %v281, 0.0
    %v336 = vmax.f32 %v286, 0.0
    %v337 = vmax.f32 %v291, 0.0
    %v338 = vmax.f32 %v296, 0.0
    %v339 = vmax.f32 %v301, 0.0
    %v340 = vmax.f32 %v306, 0.0
    %v341 = vmax.f32 %v311, 0.0
    %v342 = vmax.f32 %v316, 0.0
    %v343 = vmax.f32 %v321, 0.0
    %v344 = vmax.f32 %v326, 0.0
    %345 = vst [vmem:[#allocation2] sm:$0xff] %v329
    %346 = vst [vmem:[#allocation2 + $0x8] sm:$0xff] %v330
    %347 = vst [vmem:[#allocation2 + $0x10] sm:$0xff] %v331
    %348 = vst [vmem:[#allocation2 + $0x18] sm:$0xff] %v332
    %349 = vst [vmem:[#allocation2 + $0x20] sm:$0xff] %v333
    %350 = vst [vmem:[#allocation2 + $0x28] sm:$0xff] %v334
    %351 = vst [vmem:[#allocation2 + $0x30] sm:$0xff] %v335
    %352 = vst [vmem:[#allocation2 + $0x38] sm:$0xff] %v336
    %353 = vst [vmem:[#allocation2 + $0x40] sm:$0xff] %v337
    %354 = vst [vmem:[#allocation2 + $0x48] sm:$0xff] %v338
    %355 = vst [vmem:[#allocation2 + $0x50] sm:$0xff] %v339
    %356 = vst [vmem:[#allocation2 + $0x58] sm:$0xff] %v340
    %357 = vst [vmem:[#allocation2 + $0x60] sm:$0xff] %v341
    %358 = vst [vmem:[#allocation2 + $0x68] sm:$0xff] %v342
    %359 = vst [vmem:[#allocation2 + $0x70] sm:$0xff] %v343
    %360 = vst [vmem:[#allocation2 + $0x78] sm:$0xff] %v344
    %361 = vadd.xlane.f32.xlu0 %v329
    %v362 = vpop.xlane.xlu0 %361
    %363 = vadd.xlane.f32.xlu0 %v330
    %v364 = vpop.xlane.xlu0 %363
    %365 = vadd.xlane.f32.xlu0 %v331
    %v366 = vpop.xlane.xlu0 %365
    %367 = vadd.xlane.f32.xlu0 %v332
    %v368 = vpop.xlane.xlu0 %367
    %369 = vadd.xlane.f32.xlu0 %v333
    %v370 = vpop.xlane.xlu0 %369
    %371 = vadd.xlane.f32.xlu0 %v334
    %v372 = vpop.xlane.xlu0 %371
    %373 = vadd.xlane.f32.xlu0 %v335
    %v374 = vpop.xlane.xlu0 %373
    %375 = vadd.xlane.f32.xlu0 %v336
    %v376 = vpop.xlane.xlu0 %375
    %377 = vadd.xlane.f32.xlu0 %v337
    %v378 = vpop.xlane.xlu0 %377
    %379 = vadd.xlane.f32.xlu0 %v338
    %v380 = vpop.xlane.xlu0 %379
    %381 = vadd.xlane.f32.xlu0 %v339
    %v382 = vpop.xlane.xlu0 %381
    %383 = vadd.xlane.f32.xlu0 %v340
    %v384 = vpop.xlane.xlu0 %383
    %385 = vadd.xlane.f32.xlu0 %v341
    %v386 = vpop.xlane.xlu0 %385
    %387 = vadd.xlane.f32.xlu0 %v342
    %v388 = vpop.xlane.xlu0 %387
    %389 = vadd.xlane.f32.xlu0 %v343
    %v390 = vpop.xlane.xlu0 %389
    %391 = vadd.xlane.f32.xlu0 %v344
    %v392 = vpop.xlane.xlu0 %391
    %v393 = vmul.f32 %v329, %v329
    %v394 = vmul.f32 %v330, %v330
    %v395 = vmul.f32 %v331, %v331
    %v396 = vmul.f32 %v332, %v332
    %v397 = vmul.f32 %v333, %v333
    %v398 = vmul.f32 %v334, %v334
    %v399 = vmul.f32 %v335, %v335
    %v400 = vmul.f32 %v336, %v336
    %v401 = vmul.f32 %v337, %v337
    %v402 = vmul.f32 %v338, %v338
    %v403 = vmul.f32 %v339, %v339
    %v404 = vmul.f32 %v340, %v340
    %v405 = vmul.f32 %v341, %v341
    %v406 = vmul.f32 %v342, %v342
    %v407 = vmul.f32 %v343, %v343
    %v408 = vmul.f32 %v344, %v344
    %409 = vadd.xlane.f32.xlu0 %v393
    %v410 = vpop.xlane.xlu0 %409
    %411 = vadd.xlane.f32.xlu0 %v394
    %v412 = vpop.xlane.xlu0 %411
    %413 = vadd.xlane.f32.xlu0 %v395
    %v414 = vpop.xlane.xlu0 %413
    %415 = vadd.xlane.f32.xlu0 %v396
    %v416 = vpop.xlane.xlu0 %415
    %417 = vadd.xlane.f32.xlu0 %v397
    %v418 = vpop.xlane.xlu0 %417
    %419 = vadd.xlane.f32.xlu0 %v398
    %v420 = vpop.xlane.xlu0 %419
    %421 = vadd.xlane.f32.xlu0 %v399
    %v422 = vpop.xlane.xlu0 %421
    %423 = vadd.xlane.f32.xlu0 %v400
    %v424 = vpop.xlane.xlu0 %423
    %425 = vadd.xlane.f32.xlu0 %v401
    %v426 = vpop.xlane.xlu0 %425
    %427 = vadd.xlane.f32.xlu0 %v402
    %v428 = vpop.xlane.xlu0 %427
    %429 = vadd.xlane.f32.xlu0 %v403
    %v430 = vpop.xlane.xlu0 %429
    %431 = vadd.xlane.f32.xlu0 %v404
    %v432 = vpop.xlane.xlu0 %431
    %433 = vadd.xlane.f32.xlu0 %v405
    %v434 = vpop.xlane.xlu0 %433
    %435 = vadd.xlane.f32.xlu0 %v406
    %v436 = vpop.xlane.xlu0 %435
    %437 = vadd.xlane.f32.xlu0 %v407
    %v438 = vpop.xlane.xlu0 %437
    %439 = vadd.xlane.f32.xlu0 %v408
    %v440 = vpop.xlane.xlu0 %439
    %vm441 = vcmask 7168
    %v442 = vsel %vm441, %v362, %v410
    %v443 = vsel %vm441, %v364, %v412
    %v444 = vsel %vm441, %v366, %v414
    %v445 = vsel %vm441, %v368, %v416
    %v446 = vsel %vm441, %v370, %v418
    %v447 = vsel %vm441, %v372, %v420
    %v448 = vsel %vm441, %v374, %v422
    %v449 = vsel %vm441, %v376, %v424
    %v450 = vsel %vm441, %v378, %v426
    %v451 = vsel %vm441, %v380, %v428
    %v452 = vsel %vm441, %v382, %v430
    %v453 = vsel %vm441, %v384, %v432
    %v454 = vsel %vm441, %v386, %v434
    %v455 = vsel %vm441, %v388, %v436
    %v456 = vsel %vm441, %v390, %v438
    %v457 = vsel %vm441, %v392, %v440
    %vm458 = vcmask 15360
    %459 = vst.msk [vmem:[%s4] sm:$0xff] %vm458, %v442
    %460 = vst.msk [vmem:[%s4 + $0x8] sm:$0xff] %vm458, %v443
    %461 = vst.msk [vmem:[%s4 + $0x10] sm:$0xff] %vm458, %v444
    %462 = vst.msk [vmem:[%s4 + $0x18] sm:$0xff] %vm458, %v445
    %463 = vst.msk [vmem:[%s4 + $0x20] sm:$0xff] %vm458, %v446
    %464 = vst.msk [vmem:[%s4 + $0x28] sm:$0xff] %vm458, %v447
    %465 = vst.msk [vmem:[%s4 + $0x30] sm:$0xff] %vm458, %v448
    %466 = vst.msk [vmem:[%s4 + $0x38] sm:$0xff] %vm458, %v449
    %467 = vst.msk [vmem:[%s4 + $0x40] sm:$0xff] %vm458, %v450
    %468 = vst.msk [vmem:[%s4 + $0x48] sm:$0xff] %vm458, %v451
    %469 = vst.msk [vmem:[%s4 + $0x50] sm:$0xff] %vm458, %v452
    %470 = vst.msk [vmem:[%s4 + $0x58] sm:$0xff] %vm458, %v453
    %471 = vst.msk [vmem:[%s4 + $0x60] sm:$0xff] %vm458, %v454
    %472 = vst.msk [vmem:[%s4 + $0x68] sm:$0xff] %vm458, %v455
    %473 = vst.msk [vmem:[%s4 + $0x70] sm:$0xff] %vm458, %v456
    %474 = vst.msk [vmem:[%s4 + $0x78] sm:$0xff] %vm458, %v457
    // Predicated region
    $region14: #{tpu_custom_call.1} parent=1 // pred_check
      _
    $region15: #{tpu_custom_call.1} parent=1 // pred_check_branch
      %476 = sbr.rel (0) target = $region17
    $region16: #{tpu_custom_call.1} parent=1 // pred_region
      %s478 = ssub.s32 2048, 2048
      %479 = vsyncadd [#allocation3], %s478
      %s480 = sshll.u32 [#allocation2], 4
      %s481 = int_to_ptr.vmem [resolvable:$true] %s480
      %486 = dma.vmem_to_hbm [thread:$0]  %s481, 2048, %s3, [#allocation3], 128, 128, 8
    $region17: #{tpu_custom_call.1} parent=1 // pred_fallthru
      _
    // Predicated region
    $region18: #{tpu_custom_call.1} parent=1 // pred_check
      _
    $region19: #{tpu_custom_call.1} parent=1 // pred_check_branch
      %488 = sbr.rel (0) target = $region21
    $region20: #{tpu_custom_call.1} parent=1 // pred_region
      _
    $region21: #{tpu_custom_call.1} parent=1 // pred_fallthru
      _
    // Predicated region
    $region22: #{tpu_custom_call.1} parent=1 // pred_check
      _
    $region23: #{tpu_custom_call.1} parent=1 // pred_check_branch
      %490 = sbr.rel (0) target = $region25
    $region24: #{tpu_custom_call.1} parent=1 // pred_region
      %491 = dma.done [#allocation3], 2048
    $region25: #{tpu_custom_call.1} parent=1 // pred_fallthru
      _
    // Predicated region
    $region26: #{tpu_custom_call.1} parent=1 // pred_check
      _
    $region27: #{tpu_custom_call.1} parent=1 // pred_check_branch
      %493 = sbr.rel (0) target = $region29
    $region28: #{tpu_custom_call.1} parent=1 // pred_region
      _
    $region29: #{tpu_custom_call.1} parent=1 // pred_fallthru
      _
    %494 = vsyncpa [#allocation3], 1

</llo_original>
